<compile_context>
chip_gen: v6e
topology: v6e:2x2x1
jax: 0.10.0
libtpu: 0.0.40
codegen_flags: <defaults>
</compile_context>

<pallas_src>
import functools

import jax
import jax.numpy as jnp
from jax import lax
from jax.experimental import pallas as pl
from jax.experimental.pallas import tpu as pltpu


def _round_up(v, m):
    return ((v + m - 1) // m) * m


def _vmem_capacity_bytes():
    """Physical per-core VMEM; conservative v7x value if the query fails."""
    try:
        return int(pltpu.get_tpu_info().vmem_capacity_bytes)
    except Exception:
        return 64 * 1024 * 1024


def _block_vmem_bytes(tm, tn, H, x_itemsize, z_itemsize):
    """Per-grid-step VMEM estimate including lane padding and live intermediates."""
    h_pad = _round_up(H, 128)                       # (.., H) blocks pad to 128 lanes
    tn_pad = _round_up(tn, 128)                     # z lane dim padding
    x_bytes = 2 * tm * tn * h_pad * x_itemsize      # double-buffered input block
    mm_bytes = tm * tn * h_pad * 2                  # bf16 matmul operand copy
    work_bytes = 4 * tm * tn * h_pad * 4            # ~3-4 live f32 intermediates
    z_bytes = 2 * tm * tn_pad * z_itemsize          # double-buffered output block
    param_bytes = H * h_pad * 4 + 4 * h_pad * 4     # wd + (1,H) vectors
    return x_bytes + mm_bytes + work_bytes + z_bytes + param_bytes


def _pick_tiles(S, H, x_itemsize, z_itemsize, vmem_budget):
    """(TM, TN): keep TN wide (lane-dense z, big contiguous DMA chunks) and size TM
    so the padded live-intermediate footprint fits the VMEM budget."""
    tn = next((t for t in (512, 256, 128) if t <= S and S % t == 0), S)
    tms = [t for t in (1024, 512, 256, 128, 64, 32, 16, 8) if t <= S and S % t == 0]
    if not tms:
        tms = [S]
    for tm in tms:
        if _block_vmem_bytes(tm, tn, H, x_itemsize, z_itemsize) <= vmem_budget:
            return tm, tn
    return tms[-1], tn


def _pick_sym_tile(S):
    for ts in (256, 128):
        if S % ts == 0:
            return ts
    return S


def _distance_head_kernel(x_ref, wd_ref, bd_ref, gw_ref, c_ref, z_ref):
    """Fused dense + GELU + LayerNorm + out_proj on one (TM, TN, H) block."""
    TM, TN, H = x_ref.shape

    # dense: (TM*TN, H) @ (H, H) with low-precision operands, f32 MXU accumulation
    x2 = x_ref[...].reshape(TM * TN, H).astype(wd_ref.dtype)
    y = jnp.dot(x2, wd_ref[...], preferred_element_type=jnp.float32)
    y = y.reshape(TM, TN, H) + bd_ref[...]

    # exact erf GELU, matching torch.nn.functional.gelu default
    y = 0.5 * y * (1.0 + lax.erf(y * jnp.float32(0.7071067811865476)))

    # LayerNorm over H (eps=1e-5) with the affine folded into out_proj:
    #   sum_h(LN(y)*gamma*wo) + (beta.wo + bo) = sum_h(cent*rstd*gw) + c
    mean = jnp.mean(y, axis=-1, keepdims=True)
    cent = y - mean
    var = jnp.mean(cent * cent, axis=-1, keepdims=True)
    rstd = lax.rsqrt(var + jnp.float32(1e-5))

    z = jnp.sum(cent * (rstd * gw_ref[...]), axis=-1) + c_ref[0]
    z_ref[...] = z.astype(z_ref.dtype)


def _symmetrize_kernel(za_ref, zb_ref, out_ref):
    # za = z[i-block, j-block], zb = z[j-block, i-block]
    za = za_ref[...].astype(jnp.float32)
    zb = zb_ref[...].astype(jnp.float32)
    out_ref[...] = ((za + zb.T) * jnp.float32(0.5)).astype(out_ref.dtype)


@functools.partial(jax.jit,
                   static_argnames=("row_block", "col_block", "matmul_dtype"))
def distance_head(x, wd_t, bd, gamma, beta, wo, bo, *,
                  row_block=None, col_block=None, matmul_dtype=jnp.bfloat16):
    """x: (B, S, S, H).  wd_t: (H, H) dense weight already transposed (x @ wd_t),
    bd: (H,), gamma/beta: (H,) LayerNorm params, wo: (H,) out_proj weight, bo: ().
    Returns (B, S, S) in x.dtype."""
    B, S, S2, H = x.shape
    assert S == S2
    x_itemsize = x.dtype.itemsize
    z_dtype = x.dtype                       # z intermediate carried in input dtype
    z_itemsize = jnp.dtype(z_dtype).itemsize

    vmem_cap = _vmem_capacity_bytes()
    budget = (vmem_cap * 7) // 10
    tm_auto, tn_auto = _pick_tiles(S, H, x_itemsize, z_itemsize, budget)
    TM = int(row_block) if row_block is not None else tm_auto
    TN = int(col_block) if col_block is not None else tn_auto
    assert S % TM == 0 and S % TN == 0
    NR, NC = S // TM, S // TN

    need = _block_vmem_bytes(TM, TN, H, x_itemsize, z_itemsize)
    vmem_limit = int(min(max(need * 5 // 4, 32 * 1024 * 1024),
                         (vmem_cap * 9) // 10))

    # parameter prep: dense weight in matmul dtype; LayerNorm affine folded into
    # the out_proj weights: gw = gamma * wo, c = beta . wo + bo
    wd_mm = wd_t.astype(matmul_dtype)
    bd2 = bd.reshape(1, H).astype(jnp.float32)
    gw2 = (gamma.astype(jnp.float32) * wo.astype(jnp.float32)).reshape(1, H)
    c1 = (jnp.dot(beta.astype(jnp.float32), wo.astype(jnp.float32))
          + bo.astype(jnp.float32)).reshape(1)

    cost1 = pl.CostEstimate(
        flops=int(2 * B * S * S * H * H + 12 * B * S * S * H),
        transcendentals=int(B * S * S * H),
        bytes_accessed=int(B * S * S * H * x_itemsize + B * S * S * z_itemsize
                           + H * H * jnp.dtype(matmul_dtype).itemsize + 12 * H + 4))

    # pass 1: row/col-tiled dense + GELU + LayerNorm + out_proj -> z (B, S, S)
    z = pl.pallas_call(
        _distance_head_kernel,
        out_shape=jax.ShapeDtypeStruct((B, S, S), z_dtype),
        grid=(B, NR, NC),
        in_specs=[
            pl.BlockSpec((pl.Squeezed(), TM, TN, H), lambda b, i, j: (b, i, j, 0)),
            pl.BlockSpec((H, H), lambda b, i, j: (0, 0)),
            pl.BlockSpec((1, H), lambda b, i, j: (0, 0)),
            pl.BlockSpec((1, H), lambda b, i, j: (0, 0)),
            pl.BlockSpec(memory_space=pltpu.MemorySpace.SMEM),
        ],
        out_specs=pl.BlockSpec((pl.Squeezed(), TM, TN), lambda b, i, j: (b, i, j)),
        compiler_params=pltpu.CompilerParams(
            dimension_semantics=("parallel", "parallel", "parallel"),
            vmem_limit_bytes=vmem_limit),
        cost_estimate=cost1,
    )(x, wd_mm, bd2, gw2, c1)

    # pass 2: tiled symmetrization  out = 0.5 * (z + z^T)
    TS = _pick_sym_tile(S)
    NTS = S // TS
    cost2 = pl.CostEstimate(
        flops=int(2 * B * S * S),
        transcendentals=0,
        bytes_accessed=int(2 * B * S * S * z_itemsize + B * S * S * x_itemsize))
    out = pl.pallas_call(
        _symmetrize_kernel,
        out_shape=jax.ShapeDtypeStruct((B, S, S), x.dtype),
        grid=(B, NTS, NTS),
        in_specs=[
            pl.BlockSpec((pl.Squeezed(), TS, TS), lambda b, i, j: (b, i, j)),
            pl.BlockSpec((pl.Squeezed(), TS, TS), lambda b, i, j: (b, j, i)),
        ],
        out_specs=pl.BlockSpec((pl.Squeezed(), TS, TS), lambda b, i, j: (b, i, j)),
        compiler_params=pltpu.CompilerParams(
            dimension_semantics=("parallel", "parallel", "parallel")),
        cost_estimate=cost2,
    )(z, z)
    return out


def _reference(x, wd_t, bd, gamma, beta, wo, bo):
    """Pure-JAX reference matching the PyTorch forward (f32 math)."""
    xf = x.astype(jnp.float32)
    y = jnp.einsum("bijh,hk->bijk", xf, wd_t.astype(jnp.float32)) + bd
    y = 0.5 * y * (1.0 + lax.erf(y * 0.7071067811865476))
    mean = jnp.mean(y, axis=-1, keepdims=True)
    var = jnp.mean((y - mean) ** 2, axis=-1, keepdims=True)
    y = (y - mean) * lax.rsqrt(var + 1e-5)
    y = y * gamma + beta
    z = jnp.einsum("bijh,h->bij", y, wo) + bo
    return ((z + jnp.swapaxes(z, -1, -2)) * 0.5).astype(x.dtype)


if __name__ == "__main__":
    B, S, H = 2, 8, 32  # batch, seq_len, heads

    key = jax.random.PRNGKey(0)
    kx, kwd, kbd, kg, kbe, kwo, kbo = jax.random.split(key, 7)

    x = jax.random.normal(kx, (B, S, S, H), dtype=jnp.float32)

    # module parameters: Linear(H, H), LayerNorm(H), Linear(H, 1)
    wd = jax.random.normal(kwd, (H, H), dtype=jnp.float32) * 0.1   # (out, in)
    wd_t = wd.T                                                    # pass transposed
    bd = jax.random.normal(kbd, (H,), dtype=jnp.float32) * 0.1
    gamma = 1.0 + 0.1 * jax.random.normal(kg, (H,), dtype=jnp.float32)
    beta = 0.1 * jax.random.normal(kbe, (H,), dtype=jnp.float32)
    wo = jax.random.normal(kwo, (H,), dtype=jnp.float32) * 0.1     # (1, H) flattened
    bo = jax.random.normal(kbo, (), dtype=jnp.float32) * 0.1

    # 1) default path: bf16 MXU matmul, f32 accumulation / elementwise chain
    out = jax.block_until_ready(distance_head(x, wd_t, bd, gamma, beta, wo, bo))
    ref = _reference(x, wd_t, bd, gamma, beta, wo, bo)
    assert out.shape == (B, S, S)
    assert jnp.allclose(out, ref, atol=5e-2, rtol=5e-2), "mismatch (bf16 matmul)"

    # 2) exact f32 matmul + explicit multi-tile grid (B, 2, 2)
    S2 = 16
    x2 = jax.random.normal(jax.random.PRNGKey(1), (B, S2, S2, H), dtype=jnp.float32)
    out2 = jax.block_until_ready(
        distance_head(x2, wd_t, bd, gamma, beta, wo, bo,
                      row_block=8, col_block=8, matmul_dtype=jnp.float32))
    ref2 = _reference(x2, wd_t, bd, gamma, beta, wo, bo)
    assert out2.shape == (B, S2, S2)
    assert jnp.allclose(out2, ref2, atol=1e-4, rtol=1e-4), "mismatch (f32 tiled)"

    # 3) bf16 input path (bf16 z intermediate / bf16 output)
    x3 = x2.astype(jnp.bfloat16)
    out3 = jax.block_until_ready(distance_head(x3, wd_t, bd, gamma, beta, wo, bo))
    ref3 = _reference(x3, wd_t, bd, gamma, beta, wo, bo)
    assert out3.dtype == jnp.bfloat16
    assert jnp.allclose(out3.astype(jnp.float32), ref3.astype(jnp.float32),
                        atol=5e-2, rtol=5e-2), "mismatch (bf16 input)"

    print("KERNEL_OK")
</pallas_src>

<mosaic_0001>
module attributes {stable_mosaic.version = 11 : i64} {
  func.func @_symmetrize_kernel(%arg0: i32, %arg1: i32, %arg2: i32, %arg3: memref<1x8x8xf32, #tpu.memory_space<vmem>>, %arg4: memref<1x8x8xf32, #tpu.memory_space<vmem>>, %arg5: memref<1x8x8xf32, #tpu.memory_space<vmem>>) attributes {dimension_semantics = [#tpu.dimension_semantics<parallel>, #tpu.dimension_semantics<parallel>, #tpu.dimension_semantics<parallel>], iteration_bounds = array<i64: 2, 1, 1>, scalar_prefetch = 0 : i64, scratch_operands = 0 : i64, tpu.core_type = #tpu.core_type<tc>, window_params = [{transform_indices = @transform_0, window_bounds = array<i64: 1, 8, 8>}, {transform_indices = @transform_1, window_bounds = array<i64: 1, 8, 8>}, {transform_indices = @transform_2, window_bounds = array<i64: 1, 8, 8>}]} {
    %c0 = arith.constant 0 : index
    %c0_0 = arith.constant 0 : index
    %c0_1 = arith.constant 0 : index
    %0 = vector.load %arg3[%c0, %c0_0, %c0_1] : memref<1x8x8xf32, #tpu.memory_space<vmem>>, vector<1x8x8xf32>
    %1 = vector.shape_cast %0 : vector<1x8x8xf32> to vector<8x8xf32>
    %c0_2 = arith.constant 0 : index
    %c0_3 = arith.constant 0 : index
    %c0_4 = arith.constant 0 : index
    %2 = vector.load %arg4[%c0_2, %c0_3, %c0_4] : memref<1x8x8xf32, #tpu.memory_space<vmem>>, vector<1x8x8xf32>
    %3 = vector.shape_cast %2 : vector<1x8x8xf32> to vector<8x8xf32>
    %4 = tpu.transpose %3, [1, 0] : vector<8x8xf32> -> vector<8x8xf32>
    %5 = arith.addf %1, %4 : vector<8x8xf32>
    %cst = arith.constant 5.000000e-01 : f32
    %6 = vector.broadcast %cst : f32 to vector<8x8xf32>
    %7 = arith.mulf %5, %6 : vector<8x8xf32>
    %c0_5 = arith.constant 0 : index
    %c0_6 = arith.constant 0 : index
    %c0_7 = arith.constant 0 : index
    %8 = vector.load %arg5[%c0_5, %c0_6, %c0_7] : memref<1x8x8xf32, #tpu.memory_space<vmem>>, vector<1x8x8xf32>
    %9 = vector.shape_cast %8 : vector<1x8x8xf32> to vector<8x8xf32>
    %10 = vector.shape_cast %7 : vector<8x8xf32> to vector<1x8x8xf32>
    tpu.vector_store %arg5[%c0_5, %c0_6, %c0_7], %10 {strides = array<i32>} : memref<1x8x8xf32, #tpu.memory_space<vmem>>, vector<1x8x8xf32>,
    return
  }
  func.func @transform_0(%arg0: i32, %arg1: i32, %arg2: i32) -> (i32, i32, i32) {
    %c0_i32 = arith.constant 0 : i32
    return %arg0, %arg1, %arg2 : i32, i32, i32
  }
  func.func @transform_1(%arg0: i32, %arg1: i32, %arg2: i32) -> (i32, i32, i32) {
    %c0_i32 = arith.constant 0 : i32
    return %arg0, %arg2, %arg1 : i32, i32, i32
  }
  func.func @transform_2(%arg0: i32, %arg1: i32, %arg2: i32) -> (i32, i32, i32) {
    %c0_i32 = arith.constant 0 : i32
    return %arg0, %arg1, %arg2 : i32, i32, i32
  }
}

module attributes {stable_mosaic.version = 11 : i64} {
  func.func @_distance_head_kernel(%arg0: i32, %arg1: i32, %arg2: i32, %arg3: memref<1x8x8x32xf32, #tpu.memory_space<vmem>>, %arg4: memref<32x32xbf16, #tpu.memory_space<vmem>>, %arg5: memref<1x32xf32, #tpu.memory_space<vmem>>, %arg6: memref<1x32xf32, #tpu.memory_space<vmem>>, %arg7: memref<1xf32, #tpu.memory_space<smem>>, %arg8: memref<1x8x8xf32, #tpu.memory_space<vmem>>) attributes {dimension_semantics = [#tpu.dimension_semantics<parallel>, #tpu.dimension_semantics<parallel>, #tpu.dimension_semantics<parallel>], iteration_bounds = array<i64: 2, 1, 1>, scalar_prefetch = 0 : i64, scratch_operands = 0 : i64, tpu.core_type = #tpu.core_type<tc>, window_params = [{transform_indices = @transform_0, window_bounds = array<i64: 1, 8, 8, 32>}, {pipeline_mode = #tpu.pipeline_mode<synchronous>, transform_indices = @transform_1, window_bounds = array<i64: 32, 32>}, {pipeline_mode = #tpu.pipeline_mode<synchronous>, transform_indices = @transform_2, window_bounds = array<i64: 1, 32>}, {pipeline_mode = #tpu.pipeline_mode<synchronous>, transform_indices = @transform_3, window_bounds = array<i64: 1, 32>}, {transform_indices = @transform_4, window_bounds = array<i64: 1>}, {transform_indices = @transform_5, window_bounds = array<i64: 1, 8, 8>}]} {
    %c0 = arith.constant 0 : index
    %c0_0 = arith.constant 0 : index
    %c0_1 = arith.constant 0 : index
    %c0_2 = arith.constant 0 : index
    %0 = vector.load %arg3[%c0, %c0_0, %c0_1, %c0_2] : memref<1x8x8x32xf32, #tpu.memory_space<vmem>>, vector<1x8x8x32xf32>
    %1 = vector.shape_cast %0 : vector<1x8x8x32xf32> to vector<8x8x32xf32>
    %2 = vector.shape_cast %1 : vector<8x8x32xf32> to vector<64x32xf32>
    %3 = arith.truncf %2 : vector<64x32xf32> to vector<64x32xbf16>
    %c0_3 = arith.constant 0 : index
    %c0_4 = arith.constant 0 : index
    %4 = vector.load %arg4[%c0_3, %c0_4] : memref<32x32xbf16, #tpu.memory_space<vmem>>, vector<32x32xbf16>
    %cst = arith.constant dense<0.000000e+00> : vector<64x32xf32>
    %5 = tpu.matmul %3, %4, %cst {dimension_numbers = #tpu.dot_dimension_numbers<[1], [0], [0], [1], [0, 0, 1, 1], [], []>} : vector<64x32xbf16>, vector<32x32xbf16>, vector<64x32xf32> -> vector<64x32xf32>
    %6 = vector.shape_cast %5 : vector<64x32xf32> to vector<8x8x32xf32>
    %c0_5 = arith.constant 0 : index
    %c0_6 = arith.constant 0 : index
    %7 = vector.load %arg5[%c0_5, %c0_6] : memref<1x32xf32, #tpu.memory_space<vmem>>, vector<1x32xf32>
    %8 = vector.shape_cast %7 : vector<1x32xf32> to vector<1x1x32xf32>
    %9 = vector.broadcast %8 : vector<1x1x32xf32> to vector<8x8x32xf32>
    %10 = arith.addf %6, %9 : vector<8x8x32xf32>
    %cst_7 = arith.constant 5.000000e-01 : f32
    %11 = vector.broadcast %cst_7 : f32 to vector<8x8x32xf32>
    %12 = arith.mulf %11, %10 : vector<8x8x32xf32>
    %cst_8 = arith.constant 0.707106769 : f32
    %13 = vector.broadcast %cst_8 : f32 to vector<8x8x32xf32>
    %14 = arith.mulf %10, %13 : vector<8x8x32xf32>
    %15 = math.erf %14 : vector<8x8x32xf32>
    %cst_9 = arith.constant 1.000000e+00 : f32
    %16 = vector.broadcast %cst_9 : f32 to vector<8x8x32xf32>
    %17 = arith.addf %16, %15 : vector<8x8x32xf32>
    %18 = arith.mulf %12, %17 : vector<8x8x32xf32>
    %cst_10 = arith.constant dense<0.000000e+00> : vector<8x8xf32>
    %19 = vector.multi_reduction <add>, %18, %cst_10 [2] : vector<8x8x32xf32> to vector<8x8xf32>
    %20 = vector.shape_cast %19 : vector<8x8xf32> to vector<8x8x1xf32>
    %cst_11 = arith.constant 3.200000e+01 : f32
    %21 = vector.broadcast %cst_11 : f32 to vector<8x8x1xf32>
    %22 = arith.divf %20, %21 : vector<8x8x1xf32>
    %23 = vector.broadcast %22 : vector<8x8x1xf32> to vector<8x8x32xf32>
    %24 = arith.subf %18, %23 : vector<8x8x32xf32>
    %25 = arith.mulf %24, %24 : vector<8x8x32xf32>
    %cst_12 = arith.constant dense<0.000000e+00> : vector<8x8xf32>
    %26 = vector.multi_reduction <add>, %25, %cst_12 [2] : vector<8x8x32xf32> to vector<8x8xf32>
    %27 = vector.shape_cast %26 : vector<8x8xf32> to vector<8x8x1xf32>
    %cst_13 = arith.constant 3.200000e+01 : f32
    %28 = vector.broadcast %cst_13 : f32 to vector<8x8x1xf32>
    %29 = arith.divf %27, %28 : vector<8x8x1xf32>
    %cst_14 = arith.constant 9.99999974E-6 : f32
    %30 = vector.broadcast %cst_14 : f32 to vector<8x8x1xf32>
    %31 = arith.addf %29, %30 : vector<8x8x1xf32>
    %32 = math.rsqrt %31 : vector<8x8x1xf32>
    %c0_15 = arith.constant 0 : index
    %c0_16 = arith.constant 0 : index
    %33 = vector.load %arg6[%c0_15, %c0_16] : memref<1x32xf32, #tpu.memory_space<vmem>>, vector<1x32xf32>
    %34 = vector.shape_cast %33 : vector<1x32xf32> to vector<1x1x32xf32>
    %35 = vector.broadcast %32 : vector<8x8x1xf32> to vector<8x8x32xf32>
    %36 = vector.broadcast %34 : vector<1x1x32xf32> to vector<8x8x32xf32>
    %37 = arith.mulf %35, %36 : vector<8x8x32xf32>
    %38 = arith.mulf %24, %37 : vector<8x8x32xf32>
    %cst_17 = arith.constant dense<0.000000e+00> : vector<8x8xf32>
    %39 = vector.multi_reduction <add>, %38, %cst_17 [2] : vector<8x8x32xf32> to vector<8x8xf32>
    %c0_18 = arith.constant 0 : index
    %40 = memref.load %arg7[%c0_18] : memref<1xf32, #tpu.memory_space<smem>>
    %41 = vector.broadcast %40 : f32 to vector<8x8xf32>
    %42 = arith.addf %39, %41 : vector<8x8xf32>
    %c0_19 = arith.constant 0 : index
    %c0_20 = arith.constant 0 : index
    %c0_21 = arith.constant 0 : index
    %43 = vector.load %arg8[%c0_19, %c0_20, %c0_21] : memref<1x8x8xf32, #tpu.memory_space<vmem>>, vector<1x8x8xf32>
    %44 = vector.shape_cast %43 : vector<1x8x8xf32> to vector<8x8xf32>
    %45 = vector.shape_cast %42 : vector<8x8xf32> to vector<1x8x8xf32>
    tpu.vector_store %arg8[%c0_19, %c0_20, %c0_21], %45 {strides = array<i32>} : memref<1x8x8xf32, #tpu.memory_space<vmem>>, vector<1x8x8xf32>,
    return
  }
  func.func @transform_0(%arg0: i32, %arg1: i32, %arg2: i32) -> (i32, i32, i32, i32) {
    %c0_i32 = arith.constant 0 : i32
    %c0_i32_0 = arith.constant 0 : i32
    return %arg0, %arg1, %arg2, %c0_i32 : i32, i32, i32, i32
  }
  func.func @transform_1(%arg0: i32, %arg1: i32, %arg2: i32) -> (i32, i32) {
    %c0_i32 = arith.constant 0 : i32
    %c0_i32_0 = arith.constant 0 : i32
    %c0_i32_1 = arith.constant 0 : i32
    return %c0_i32, %c0_i32_0 : i32, i32
  }
  func.func @transform_2(%arg0: i32, %arg1: i32, %arg2: i32) -> (i32, i32) {
    %c0_i32 = arith.constant 0 : i32
    %c0_i32_0 = arith.constant 0 : i32
    %c0_i32_1 = arith.constant 0 : i32
    return %c0_i32, %c0_i32_0 : i32, i32
  }
  func.func @transform_3(%arg0: i32, %arg1: i32, %arg2: i32) -> (i32, i32) {
    %c0_i32 = arith.constant 0 : i32
    %c0_i32_0 = arith.constant 0 : i32
    %c0_i32_1 = arith.constant 0 : i32
    return %c0_i32, %c0_i32_0 : i32, i32
  }
  func.func @transform_4(%arg0: i32, %arg1: i32, %arg2: i32) -> i32 {
    %c0_i32 = arith.constant 0 : i32
    %c0_i32_0 = arith.constant 0 : i32
    return %c0_i32 : i32
  }
  func.func @transform_5(%arg0: i32, %arg1: i32, %arg2: i32) -> (i32, i32, i32) {
    %c0_i32 = arith.constant 0 : i32
    return %arg0, %arg1, %arg2 : i32, i32, i32
  }
}

</mosaic_0001>

<llo_original>
// kernel: distance_head.3
$region0: #{distance_head.3}
  #allocation0 [shape = 'u32[]', space=smem, size = 0x4, offset = 0x4, fixed_abs, tag = 'smem constant byte address 0x4 - core index']
  #allocation1 [shape = 'u32[144,128]{1,0:T(1,128)}', space=vmem, size = 0x12000, scoped, tag = 'internal scratch']
  %s0 = inlined_call_operand.vmem [shape: f32[2,8,8], index: 0, kind: input, shape index: {}, may-alias: {0,1}]
  %s1 = inlined_call_operand.vmem [shape: f32[2,8,8], index: 1, kind: input, shape index: {}, may-alias: {0,1}]
  %s2 = inlined_call_operand.hbm [shape: f32[2,8,8], index: 2, kind: output, shape index: {}]
  %s3 = sld [smem:[#allocation0]]
  $region41: #{distance_head.3} parent=0
    _
  %s5 = ssub.s32 1, %s3
  %s6 = scalar_select 0, %s5, %s3
  $region1: #{distance_head.3} parent=0
    #allocation2 [shape = 'u8[8192]{0}', space=vmem, size = 0x2000, scoped, tag = 'output window, operand 0']
    #allocation3 [shape = 's32[2]{0}', space=sflag, size = 0x8, scoped, tag = 'scoped memory for distance_head.3']
    %7 = vsyncpa [#allocation3], 0
    %s8 = scalar_lea.sflag [#allocation3], 1
    %9 = vsyncpa %s8, 0
    loop: start=0, step=1, limit=4
    $region2: #{distance_head.3} parent=1 // loop_pre_header
      _
    $region3: #{distance_head.3} parent=1 // loop_header
      %s11 = sphi 0, %s15
      %p12 = scmp.ge.s32.totalorder %s11, 4
      %s18 = sphi 0, %s37
      %s19 = sphi 0, %s33
      %s20 = sphi 0, %s29
      %s21 = sphi 0, %s18
      %s22 = sphi 0, %s19
      %s23 = sphi 0, %s20
      %s24 = sphi 0, %s21
      %s25 = sphi 0, %s22
      %s26 = sphi 0, %s23
      %s44 = sphi 0, %s46
      %s47 = sphi 0, %s44
      %s48 = sphi 0, %s47
      %s64 = sphi 0, %s48
      %s74 = sphi 0, %s76
      %s77 = sphi 0, %s74
      %s78 = sphi 0, %s77
      %s94 = sphi 0, %s78
      %s104 = sphi 0, %s106
      %s107 = sphi 0, %s104
      %s108 = sphi 0, %s107
      %s124 = sphi 0, %s108
    $region4: #{distance_head.3} parent=1 // loop_header_branch
      %14 = sbr.rel (%p12) target = $region8
    $region5: #{distance_head.3} parent=1 // loop_body
      %s16 = ssub.s32 %s11, 1
      %s17 = ssub.s32 %s11, 2
      %s27 = sadd.s32 1, %s20
      %p28 = scmp.ge.s32.totalorder %s27, 1
      %s29 = scalar_select %p28, 0, %s27
      %s30 = sadd.s32 1, %s19
      %s31 = scalar_select %p28, %s30, %s19
      %p32 = scmp.ge.s32.totalorder %s31, 1
      %s33 = scalar_select %p32, 0, %s31
      %s34 = sadd.s32 1, %s18
      %s35 = scalar_select %p32, %s34, %s18
      %p36 = scmp.ge.s32.totalorder %s35, 2
      %s37 = scalar_select %p36, 0, %s35
      %s38 = ssub.s32 %s18, %s37
      %s39 = ssub.s32 %s19, %s33
      %s40 = sor.u32 %s38, %s39
      %s41 = ssub.s32 %s20, %s29
      %s42 = sor.u32 %s40, %s41
      %p43 = scmp.eq.s32.totalorder %s42, 0
      %s45 = sadd.s32 %s44, 1
      %s46 = scalar_select %p43, %s44, %s45
      %p49 = pneg %p43
      %p50 = scmp.eq.s32.totalorder %s11, 1
      %p51 = por %p49, %p50
      %p52 = scmp.ne.s32.totalorder %s44, %s47
      %p53 = scmp.eq.s32.totalorder %s11, 0
      %p54 = por %p52, %p53
      %p55 = scmp.ne.s32.totalorder %s44, %s47
      %p56 = scmp.eq.s32.totalorder %s16, 1
      %p57 = por %p55, %p56
      %p58 = scmp.ne.s32.totalorder %s47, %s48
      %p59 = scmp.eq.s32.totalorder %s16, 0
      %p60 = por %p58, %p59
      %p61 = scmp.ne.s32.totalorder %s47, %s48
      %p62 = scmp.eq.s32.totalorder %s17, 1
      %p63 = por %p61, %p62
      %p65 = scmp.ne.s32.totalorder %s48, %s64
      %p66 = scmp.eq.s32.totalorder %s17, 0
      %p67 = por %p65, %p66
      %s68 = ssub.s32 %s18, %s37
      %s69 = ssub.s32 %s20, %s29
      %s70 = sor.u32 %s68, %s69
      %s71 = ssub.s32 %s19, %s33
      %s72 = sor.u32 %s70, %s71
      %p73 = scmp.eq.s32.totalorder %s72, 0
      %s75 = sadd.s32 %s74, 1
      %s76 = scalar_select %p73, %s74, %s75
      %p79 = pneg %p73
      %p80 = scmp.eq.s32.totalorder %s11, 1
      %p81 = por %p79, %p80
      %p82 = scmp.ne.s32.totalorder %s74, %s77
      %p83 = scmp.eq.s32.totalorder %s11, 0
      %p84 = por %p82, %p83
      %p85 = scmp.ne.s32.totalorder %s74, %s77
      %p86 = scmp.eq.s32.totalorder %s16, 1
      %p87 = por %p85, %p86
      %p88 = scmp.ne.s32.totalorder %s77, %s78
      %p89 = scmp.eq.s32.totalorder %s16, 0
      %p90 = por %p88, %p89
      %p91 = scmp.ne.s32.totalorder %s77, %s78
      %p92 = scmp.eq.s32.totalorder %s17, 1
      %p93 = por %p91, %p92
      %p95 = scmp.ne.s32.totalorder %s78, %s94
      %p96 = scmp.eq.s32.totalorder %s17, 0
      %p97 = por %p95, %p96
      %s98 = ssub.s32 %s18, %s37
      %s99 = ssub.s32 %s19, %s33
      %s100 = sor.u32 %s98, %s99
      %s101 = ssub.s32 %s20, %s29
      %s102 = sor.u32 %s100, %s101
      %p103 = scmp.eq.s32.totalorder %s102, 0
      %s105 = sadd.s32 %s104, 1
      %s106 = scalar_select %p103, %s104, %s105
      %p109 = pneg %p103
      %p110 = scmp.eq.s32.totalorder %s11, 1
      %p111 = por %p109, %p110
      %p112 = scmp.ne.s32.totalorder %s104, %s107
      %p113 = scmp.eq.s32.totalorder %s11, 0
      %p114 = por %p112, %p113
      %p115 = scmp.ne.s32.totalorder %s104, %s107
      %p116 = scmp.eq.s32.totalorder %s16, 1
      %p117 = por %p115, %p116
      %p118 = scmp.ne.s32.totalorder %s107, %s108
      %p119 = scmp.eq.s32.totalorder %s16, 0
      %p120 = por %p118, %p119
      %p121 = scmp.ne.s32.totalorder %s107, %s108
      %p122 = scmp.eq.s32.totalorder %s17, 1
      %p123 = por %p121, %p122
      %p125 = scmp.ne.s32.totalorder %s108, %s124
      %p126 = scmp.eq.s32.totalorder %s17, 0
      %p127 = por %p125, %p126
      %p128 = scmp.le.s32.totalorder 1, %s11
      %p129 = scmp.lt.s32.totalorder %s11, 3
      %p130 = pnand %p128, %p129
      %p131 = pneg %p130
      // Predicated region
      $region9: #{distance_head.3} parent=5 // pred_check
        _
      $region10: #{distance_head.3} parent=5 // pred_check_branch
        %133 = sbr.rel (%p130) target = $region12
      $region11: #{distance_head.3} parent=5 // pred_region
        %s134 = ssub.s32 %s11, 1
      $region12: #{distance_head.3} parent=5 // pred_fallthru
        _
      %p135 = scmp.lt.s32.totalorder %s11, 2
      // Predicated region
      $region13: #{distance_head.3} parent=5 // pred_check
        %p136 = pneg %p135
      $region14: #{distance_head.3} parent=5 // pred_check_branch
        %138 = sbr.rel (%p136) target = $region16
      $region15: #{distance_head.3} parent=5 // pred_region
        // Predicated region
        $region17: #{distance_head.3} parent=15 // pred_check
          %p139 = pneg %p54
        $region18: #{distance_head.3} parent=15 // pred_check_branch
          %141 = sbr.rel (%p139) target = $region20
        $region19: #{distance_head.3} parent=15 // pred_region
          %p142 = scmp.lt.s32.totalorder %s18, 1
          %s143 = scalar_select %p142, %s18, 1
          %p144 = scmp.lt.s32.totalorder %s19, 0
          %s145 = scalar_select %p144, %s19, 0
          %p146 = scmp.lt.s32.totalorder %s20, 0
          %s147 = scalar_select %p146, %s20, 0
          %s148 = sadd.s32 %s147, %s145
          %s149 = sadd.s32 %s148, %s143
          %s150 = smul.addr %s149, 8
          %s151 = scalar_lea.vmem %s0, %s150
        $region20: #{distance_head.3} parent=15 // pred_fallthru
          _
        // Predicated region
        $region21: #{distance_head.3} parent=15 // pred_check
          %p152 = pneg %p84
        $region22: #{distance_head.3} parent=15 // pred_check_branch
          %154 = sbr.rel (%p152) target = $region24
        $region23: #{distance_head.3} parent=15 // pred_region
          %p155 = scmp.lt.s32.totalorder %s18, 1
          %s156 = scalar_select %p155, %s18, 1
          %p157 = scmp.lt.s32.totalorder %s20, 0
          %s158 = scalar_select %p157, %s20, 0
          %p159 = scmp.lt.s32.totalorder %s19, 0
          %s160 = scalar_select %p159, %s19, 0
          %s161 = sadd.s32 %s160, %s158
          %s162 = sadd.s32 %s161, %s156
          %s163 = smul.addr %s162, 8
          %s164 = scalar_lea.vmem %s1, %s163
        $region24: #{distance_head.3} parent=15 // pred_fallthru
          _
      $region16: #{distance_head.3} parent=5 // pred_fallthru
        _
      %p165 = scmp.le.s32.totalorder 1, %s11
      %p166 = scmp.lt.s32.totalorder %s11, 3
      %p167 = pnand %p165, %p166
      %p168 = pneg %p167
      // Predicated region
      $region25: #{distance_head.3} parent=5 // pred_check
        _
      $region26: #{distance_head.3} parent=5 // pred_check_branch
        %170 = sbr.rel (%p167) target = $region28
      $region27: #{distance_head.3} parent=5 // pred_region
        %s171 = ssub.s32 %s11, 1
        %p172 = scmp.lt.s32.totalorder %s21, 1
        %s173 = scalar_select %p172, %s21, 1
        %p174 = scmp.lt.s32.totalorder %s22, 0
        %s175 = scalar_select %p174, %s22, 0
        %p176 = scmp.lt.s32.totalorder %s23, 0
        %s177 = scalar_select %p176, %s23, 0
        %s178 = sadd.s32 %s177, %s175
        %s179 = sadd.s32 %s178, %s173
        %s180 = smul.addr %s179, 8
        %s181 = scalar_lea.vmem %s0, %s180
        %p182 = pneg %p60
        %p183 = pneg %p57
        %p184 = scmp.lt.s32.totalorder %s21, 1
        %s185 = scalar_select %p184, %s21, 1
        %p186 = scmp.lt.s32.totalorder %s23, 0
        %s187 = scalar_select %p186, %s23, 0
        %p188 = scmp.lt.s32.totalorder %s22, 0
        %s189 = scalar_select %p188, %s22, 0
        %s190 = sadd.s32 %s189, %s187
        %s191 = sadd.s32 %s190, %s185
        %s192 = smul.addr %s191, 8
        %s193 = scalar_lea.vmem %s1, %s192
        %p194 = pneg %p90
        %p195 = pneg %p87
        %p196 = pneg %p120
        %p197 = pneg %p117
        %s198 = sand.u32 %s107, 1
        %s199 = scalar_lea.sflag [#allocation3], %s198
        %s200 = sand.u32 %s107, 1
        %s201 = smul.addr %s200, 8
        %s202 = scalar_lea.vmem [#allocation2], %s201
        %p203 = scmp.lt.s32.totalorder %s21, 1
        %s204 = scalar_select %p203, %s21, 1
        %p205 = scmp.lt.s32.totalorder %s22, 0
        %s206 = scalar_select %p205, %s22, 0
        %p207 = scmp.lt.s32.totalorder %s23, 0
        %s208 = scalar_select %p207, %s23, 0
        %s209 = sadd.s32 %s208, %s206
        %s210 = sadd.s32 %s209, %s204
        %s211 = smul.addr %s210, 8
        %s212 = scalar_lea.vmem %s0, %s211
        %p213 = scmp.lt.s32.totalorder %s21, 1
        %s214 = scalar_select %p213, %s21, 1
        %p215 = scmp.lt.s32.totalorder %s23, 0
        %s216 = scalar_select %p215, %s23, 0
        %p217 = scmp.lt.s32.totalorder %s22, 0
        %s218 = scalar_select %p217, %s22, 0
        %s219 = sadd.s32 %s218, %s216
        %s220 = sadd.s32 %s219, %s214
        %s221 = smul.addr %s220, 8
        %s222 = scalar_lea.vmem %s1, %s221
        %v223 = vld [vmem:[%s212] sm:$0xff]
        %v224 = vld [vmem:[%s222] sm:$0xff]
        %225 = vxpose.xlu0.b32.start [1/16] %v224, 128
        %226 = vxpose.xlu0.b32.cont [2/16] 0.0, 128
        %227 = vxpose.xlu0.b32.cont [3/16] 0.0, 128
        %228 = vxpose.xlu0.b32.cont [4/16] 0.0, 128
        %229 = vxpose.xlu0.b32.cont [5/16] 0.0, 128
        %230 = vxpose.xlu0.b32.cont [6/16] 0.0, 128
        %231 = vxpose.xlu0.b32.cont [7/16] 0.0, 128
        %232 = vxpose.xlu0.b32.cont [8/16] 0.0, 128
        %233 = vxpose.xlu0.b32.cont [9/16] 0.0, 128
        %234 = vxpose.xlu0.b32.cont [10/16] 0.0, 128
        %235 = vxpose.xlu0.b32.cont [11/16] 0.0, 128
        %236 = vxpose.xlu0.b32.cont [12/16] 0.0, 128
        %237 = vxpose.xlu0.b32.cont [13/16] 0.0, 128
        %238 = vxpose.xlu0.b32.cont [14/16] 0.0, 128
        %239 = vxpose.xlu0.b32.cont [15/16] 0.0, 128
        %240 = vxpose.xlu0.b32.end [16/16] 0.0, 128
        %v241 = vpop.trf.xlu0
        %v242 = vpop.trf.xlu0
        %v243 = vpop.trf.xlu0
        %v244 = vpop.trf.xlu0
        %v245 = vpop.trf.xlu0
        %v246 = vpop.trf.xlu0
        %v247 = vpop.trf.xlu0
        %v248 = vpop.trf.xlu0
        %v249 = vpop.trf.xlu0
        %v250 = vpop.trf.xlu0
        %v251 = vpop.trf.xlu0
        %v252 = vpop.trf.xlu0
        %v253 = vpop.trf.xlu0
        %v254 = vpop.trf.xlu0
        %v255 = vpop.trf.xlu0
        %v256 = vpop.trf.xlu0
        %v257 = vadd.f32 %v223, %v241
        %v258 = vmul.f32 %v257, 0.5
        %vm259 = vcmask 64512
        %260 = vst.msk [vmem:[%s202] sm:$0xff] %vm259, %v258
        %s261 = sand.u32 %s107, 1
        %s262 = scalar_lea.sflag [#allocation3], %s261
        %s263 = sand.u32 %s107, 1
        %s264 = smul.addr %s263, 8
        %s265 = scalar_lea.vmem [#allocation2], %s264
        // Predicated region
        $region29: #{distance_head.3} parent=27 // pred_check
          %p266 = pneg %p117
        $region30: #{distance_head.3} parent=27 // pred_check_branch
          %268 = sbr.rel (%p266) target = $region32
        $region31: #{distance_head.3} parent=27 // pred_region
          %s270 = ssub.s32 128, 128
          %271 = vsyncadd %s262, %s270
          %s272 = sadd.s32 %s23, %s22
          %s273 = sadd.s32 %s272, %s21
          %s274 = smul.addr %s273, 128
          %s275 = scalar_lea.hbm %s2, %s274
          %s277 = sshll.u32 %s265, 4
          %s278 = int_to_ptr.vmem [resolvable:$true] %s277
          %280 = dma.vmem_to_hbm [thread:$0]  %s278, 128, %s275, %s262
        $region32: #{distance_head.3} parent=27 // pred_fallthru
          _
      $region28: #{distance_head.3} parent=5 // pred_fallthru
        _
      %p281 = scmp.le.s32.totalorder 2, %s11
      // Predicated region
      $region33: #{distance_head.3} parent=5 // pred_check
        %p282 = pneg %p281
      $region34: #{distance_head.3} parent=5 // pred_check_branch
        %284 = sbr.rel (%p282) target = $region36
      $region35: #{distance_head.3} parent=5 // pred_region
        %s285 = ssub.s32 %s11, 2
        // Predicated region
        $region37: #{distance_head.3} parent=35 // pred_check
          %p286 = pneg %p123
        $region38: #{distance_head.3} parent=35 // pred_check_branch
          %288 = sbr.rel (%p286) target = $region40
        $region39: #{distance_head.3} parent=35 // pred_region
          %s289 = sand.u32 %s108, 1
          %s290 = scalar_lea.sflag [#allocation3], %s289
          %s291 = sand.u32 %s108, 1
          %s292 = smul.addr %s291, 8
          %s293 = scalar_lea.vmem [#allocation2], %s292
          %294 = dma.done %s290, 128
        $region40: #{distance_head.3} parent=35 // pred_fallthru
          _
      $region36: #{distance_head.3} parent=5 // pred_fallthru
        _
    $region6: #{distance_head.3} parent=1 // loop_footer
      %s15 = sadd.s32 1, %s11
    $region7: #{distance_head.3} parent=1 // loop_footer_branch
      %10 = sbr.rel target = $region3
    $region8: #{distance_head.3} parent=1 // loop_exit
      _
    %295 = vsyncpa [#allocation3], 1
    %s296 = scalar_lea.sflag [#allocation3], 1
    %297 = vsyncpa %s296, 1

// kernel: distance_head.2
$region0: #{distance_head.2}
  #allocation0 [shape = 'u32[]', space=smem, size = 0x4, offset = 0x4, fixed_abs, tag = 'smem constant byte address 0x4 - core index']
  #allocation1 [shape = 'u32[144,128]{1,0:T(1,128)}', space=vmem, size = 0x12000, scoped, tag = 'internal scratch']
  #allocation2 [shape = 'f32[1]{0:T(128)S(6)}', space=smem, size = 0x200, scoped, tag = 'scoped memory for distance_head.2']
  %s0 = inlined_call_operand.hbm [shape: f32[2,8,8,32], index: 0, kind: input, shape index: {}]
  %s1 = inlined_call_operand.vmem [shape: bf16[32,32], index: 1, kind: input, shape index: {}]
  %s2 = inlined_call_operand.vmem [shape: f32[1,32], index: 2, kind: input, shape index: {}]
  %s3 = inlined_call_operand.vmem [shape: f32[1,32], index: 3, kind: input, shape index: {}]
  %s4 = inlined_call_operand.<no memory space> [shape: f32[1], index: 4, kind: input, shape index: {}]
  %s5 = inlined_call_operand.vmem [shape: f32[2,8,8], index: 5, kind: output, shape index: {}]
  %s6 = sld [smem:[#allocation0]]
  $region57: #{distance_head.2} parent=0
    _
  %s8 = ssub.s32 1, %s6
  %s9 = scalar_select 0, %s8, %s6
  %10 = sst [smem:[#allocation2]] %s4
  $region1: #{distance_head.2} parent=0
    #allocation3 [shape = 'u8[65536]{0}', space=vmem, size = 0x10000, scoped, tag = 'input window, operand 0']
    #allocation4 [shape = 's32[2]{0}', space=sflag, size = 0x8, scoped, tag = 'scoped memory for distance_head.2']
    %11 = vsyncpa [#allocation4], 0
    %s12 = scalar_lea.sflag [#allocation4], 1
    %13 = vsyncpa %s12, 0
    loop: start=0, step=1, limit=4
    $region2: #{distance_head.2} parent=1 // loop_pre_header
      _
    $region3: #{distance_head.2} parent=1 // loop_header
      %s15 = sphi 0, %s19
      %p16 = scmp.ge.s32.totalorder %s15, 4
      %s22 = sphi 0, %s41
      %s23 = sphi 0, %s37
      %s24 = sphi 0, %s33
      %s25 = sphi 0, %s22
      %s26 = sphi 0, %s23
      %s27 = sphi 0, %s24
      %s28 = sphi 0, %s25
      %s29 = sphi 0, %s26
      %s30 = sphi 0, %s27
      %s48 = sphi 0, %s50
      %s51 = sphi 0, %s48
      %s52 = sphi 0, %s51
      %s68 = sphi 0, %s52
      %s72 = sphi 0, %s72
      %s74 = sphi 0, %s72
      %s75 = sphi 0, %s74
      %s89 = sphi 0, %s75
      %s93 = sphi 0, %s93
      %s95 = sphi 0, %s93
      %s96 = sphi 0, %s95
      %s110 = sphi 0, %s96
      %s114 = sphi 0, %s114
      %s116 = sphi 0, %s114
      %s117 = sphi 0, %s116
      %s131 = sphi 0, %s117
      %s135 = sphi 0, %s135
      %s137 = sphi 0, %s135
      %s138 = sphi 0, %s137
      %s152 = sphi 0, %s138
      %s162 = sphi 0, %s164
      %s165 = sphi 0, %s162
      %s166 = sphi 0, %s165
      %s182 = sphi 0, %s166
    $region4: #{distance_head.2} parent=1 // loop_header_branch
      %18 = sbr.rel (%p16) target = $region8
    $region5: #{distance_head.2} parent=1 // loop_body
      %s20 = ssub.s32 %s15, 1
      %s21 = ssub.s32 %s15, 2
      %s31 = sadd.s32 1, %s24
      %p32 = scmp.ge.s32.totalorder %s31, 1
      %s33 = scalar_select %p32, 0, %s31
      %s34 = sadd.s32 1, %s23
      %s35 = scalar_select %p32, %s34, %s23
      %p36 = scmp.ge.s32.totalorder %s35, 1
      %s37 = scalar_select %p36, 0, %s35
      %s38 = sadd.s32 1, %s22
      %s39 = scalar_select %p36, %s38, %s22
      %p40 = scmp.ge.s32.totalorder %s39, 2
      %s41 = scalar_select %p40, 0, %s39
      %s42 = ssub.s32 %s22, %s41
      %s43 = ssub.s32 %s23, %s37
      %s44 = sor.u32 %s42, %s43
      %s45 = ssub.s32 %s24, %s33
      %s46 = sor.u32 %s44, %s45
      %p47 = scmp.eq.s32.totalorder %s46, 0
      %s49 = sadd.s32 %s48, 1
      %s50 = scalar_select %p47, %s48, %s49
      %p53 = pneg %p47
      %p54 = scmp.eq.s32.totalorder %s15, 1
      %p55 = por %p53, %p54
      %p56 = scmp.ne.s32.totalorder %s48, %s51
      %p57 = scmp.eq.s32.totalorder %s15, 0
      %p58 = por %p56, %p57
      %p59 = scmp.ne.s32.totalorder %s48, %s51
      %p60 = scmp.eq.s32.totalorder %s20, 1
      %p61 = por %p59, %p60
      %p62 = scmp.ne.s32.totalorder %s51, %s52
      %p63 = scmp.eq.s32.totalorder %s20, 0
      %p64 = por %p62, %p63
      %p65 = scmp.ne.s32.totalorder %s51, %s52
      %p66 = scmp.eq.s32.totalorder %s21, 1
      %p67 = por %p65, %p66
      %p69 = scmp.ne.s32.totalorder %s52, %s68
      %p70 = scmp.eq.s32.totalorder %s21, 0
      %p71 = por %p69, %p70
      %s73 = sadd.s32 %s72, 1
      %p76 = scmp.eq.s32.totalorder %s15, 1
      %p77 = scmp.ne.s32.totalorder %s72, %s74
      %p78 = scmp.eq.s32.totalorder %s15, 0
      %p79 = por %p77, %p78
      %p80 = scmp.ne.s32.totalorder %s72, %s74
      %p81 = scmp.eq.s32.totalorder %s20, 1
      %p82 = por %p80, %p81
      %p83 = scmp.ne.s32.totalorder %s74, %s75
      %p84 = scmp.eq.s32.totalorder %s20, 0
      %p85 = por %p83, %p84
      %p86 = scmp.ne.s32.totalorder %s74, %s75
      %p87 = scmp.eq.s32.totalorder %s21, 1
      %p88 = por %p86, %p87
      %p90 = scmp.ne.s32.totalorder %s75, %s89
      %p91 = scmp.eq.s32.totalorder %s21, 0
      %p92 = por %p90, %p91
      %s94 = sadd.s32 %s93, 1
      %p97 = scmp.eq.s32.totalorder %s15, 1
      %p98 = scmp.ne.s32.totalorder %s93, %s95
      %p99 = scmp.eq.s32.totalorder %s15, 0
      %p100 = por %p98, %p99
      %p101 = scmp.ne.s32.totalorder %s93, %s95
      %p102 = scmp.eq.s32.totalorder %s20, 1
      %p103 = por %p101, %p102
      %p104 = scmp.ne.s32.totalorder %s95, %s96
      %p105 = scmp.eq.s32.totalorder %s20, 0
      %p106 = por %p104, %p105
      %p107 = scmp.ne.s32.totalorder %s95, %s96
      %p108 = scmp.eq.s32.totalorder %s21, 1
      %p109 = por %p107, %p108
      %p111 = scmp.ne.s32.totalorder %s96, %s110
      %p112 = scmp.eq.s32.totalorder %s21, 0
      %p113 = por %p111, %p112
      %s115 = sadd.s32 %s114, 1
      %p118 = scmp.eq.s32.totalorder %s15, 1
      %p119 = scmp.ne.s32.totalorder %s114, %s116
      %p120 = scmp.eq.s32.totalorder %s15, 0
      %p121 = por %p119, %p120
      %p122 = scmp.ne.s32.totalorder %s114, %s116
      %p123 = scmp.eq.s32.totalorder %s20, 1
      %p124 = por %p122, %p123
      %p125 = scmp.ne.s32.totalorder %s116, %s117
      %p126 = scmp.eq.s32.totalorder %s20, 0
      %p127 = por %p125, %p126
      %p128 = scmp.ne.s32.totalorder %s116, %s117
      %p129 = scmp.eq.s32.totalorder %s21, 1
      %p130 = por %p128, %p129
      %p132 = scmp.ne.s32.totalorder %s117, %s131
      %p133 = scmp.eq.s32.totalorder %s21, 0
      %p134 = por %p132, %p133
      %s136 = sadd.s32 %s135, 1
      %p139 = scmp.eq.s32.totalorder %s15, 1
      %p140 = scmp.ne.s32.totalorder %s135, %s137
      %p141 = scmp.eq.s32.totalorder %s15, 0
      %p142 = por %p140, %p141
      %p143 = scmp.ne.s32.totalorder %s135, %s137
      %p144 = scmp.eq.s32.totalorder %s20, 1
      %p145 = por %p143, %p144
      %p146 = scmp.ne.s32.totalorder %s137, %s138
      %p147 = scmp.eq.s32.totalorder %s20, 0
      %p148 = por %p146, %p147
      %p149 = scmp.ne.s32.totalorder %s137, %s138
      %p150 = scmp.eq.s32.totalorder %s21, 1
      %p151 = por %p149, %p150
      %p153 = scmp.ne.s32.totalorder %s138, %s152
      %p154 = scmp.eq.s32.totalorder %s21, 0
      %p155 = por %p153, %p154
      %s156 = ssub.s32 %s22, %s41
      %s157 = ssub.s32 %s23, %s37
      %s158 = sor.u32 %s156, %s157
      %s159 = ssub.s32 %s24, %s33
      %s160 = sor.u32 %s158, %s159
      %p161 = scmp.eq.s32.totalorder %s160, 0
      %s163 = sadd.s32 %s162, 1
      %s164 = scalar_select %p161, %s162, %s163
      %p167 = pneg %p161
      %p168 = scmp.eq.s32.totalorder %s15, 1
      %p169 = por %p167, %p168
      %p170 = scmp.ne.s32.totalorder %s162, %s165
      %p171 = scmp.eq.s32.totalorder %s15, 0
      %p172 = por %p170, %p171
      %p173 = scmp.ne.s32.totalorder %s162, %s165
      %p174 = scmp.eq.s32.totalorder %s20, 1
      %p175 = por %p173, %p174
      %p176 = scmp.ne.s32.totalorder %s165, %s166
      %p177 = scmp.eq.s32.totalorder %s20, 0
      %p178 = por %p176, %p177
      %p179 = scmp.ne.s32.totalorder %s165, %s166
      %p180 = scmp.eq.s32.totalorder %s21, 1
      %p181 = por %p179, %p180
      %p183 = scmp.ne.s32.totalorder %s166, %s182
      %p184 = scmp.eq.s32.totalorder %s21, 0
      %p185 = por %p183, %p184
      %p186 = scmp.le.s32.totalorder 1, %s15
      %p187 = scmp.lt.s32.totalorder %s15, 3
      %p188 = pnand %p186, %p187
      %p189 = pneg %p188
      // Predicated region
      $region9: #{distance_head.2} parent=5 // pred_check
        _
      $region10: #{distance_head.2} parent=5 // pred_check_branch
        %191 = sbr.rel (%p188) target = $region12
      $region11: #{distance_head.2} parent=5 // pred_region
        %s192 = ssub.s32 %s15, 1
        // Predicated region
        $region13: #{distance_head.2} parent=11 // pred_check
          %p193 = pneg %p85
        $region14: #{distance_head.2} parent=11 // pred_check_branch
          %195 = sbr.rel (%p193) target = $region16
        $region15: #{distance_head.2} parent=11 // pred_region
          _
        $region16: #{distance_head.2} parent=11 // pred_fallthru
          _
        // Predicated region
        $region17: #{distance_head.2} parent=11 // pred_check
          %p196 = pneg %p106
        $region18: #{distance_head.2} parent=11 // pred_check_branch
          %198 = sbr.rel (%p196) target = $region20
        $region19: #{distance_head.2} parent=11 // pred_region
          _
        $region20: #{distance_head.2} parent=11 // pred_fallthru
          _
        // Predicated region
        $region21: #{distance_head.2} parent=11 // pred_check
          %p199 = pneg %p127
        $region22: #{distance_head.2} parent=11 // pred_check_branch
          %201 = sbr.rel (%p199) target = $region24
        $region23: #{distance_head.2} parent=11 // pred_region
          _
        $region24: #{distance_head.2} parent=11 // pred_fallthru
          _
        // Predicated region
        $region25: #{distance_head.2} parent=11 // pred_check
          %p202 = pneg %p148
        $region26: #{distance_head.2} parent=11 // pred_check_branch
          %204 = sbr.rel (%p202) target = $region28
        $region27: #{distance_head.2} parent=11 // pred_region
          _
        $region28: #{distance_head.2} parent=11 // pred_fallthru
          _
      $region12: #{distance_head.2} parent=5 // pred_fallthru
        _
      %p205 = scmp.lt.s32.totalorder %s15, 2
      // Predicated region
      $region29: #{distance_head.2} parent=5 // pred_check
        %p206 = pneg %p205
      $region30: #{distance_head.2} parent=5 // pred_check_branch
        %208 = sbr.rel (%p206) target = $region32
      $region31: #{distance_head.2} parent=5 // pred_region
        // Predicated region
        $region33: #{distance_head.2} parent=31 // pred_check
          %p209 = pneg %p58
        $region34: #{distance_head.2} parent=31 // pred_check_branch
          %211 = sbr.rel (%p209) target = $region36
        $region35: #{distance_head.2} parent=31 // pred_region
          %s212 = sand.u32 %s48, 1
          %s213 = scalar_lea.sflag [#allocation4], %s212
          %s214 = sand.u32 %s48, 1
          %s215 = smul.addr %s214, 64
          %s216 = scalar_lea.vmem [#allocation3], %s215
          %s217 = smul.u32 8, %s23
          %s219 = ssub.s32 1024, 1024
          %220 = vsyncadd %s213, %s219
          %s221 = sadd.s32 %s24, %s217
          %s222 = smul.addr %s22, 8
          %s223 = sadd.s32 %s221, %s222
          %s224 = smul.addr %s223, 128
          %s225 = scalar_lea.hbm %s0, %s224
          %s226 = sshll.u32 %s216, 4
          %s227 = int_to_ptr.vmem [resolvable:$true] %s226
          %232 = dma.hbm_to_vmem [thread:$0]  %s225, 1024, %s227, %s213, 128, 128, 8
        $region36: #{distance_head.2} parent=31 // pred_fallthru
          _
      $region32: #{distance_head.2} parent=5 // pred_fallthru
        _
      %p233 = scmp.le.s32.totalorder 1, %s15
      %p234 = scmp.lt.s32.totalorder %s15, 3
      %p235 = pnand %p233, %p234
      %p236 = pneg %p235
      // Predicated region
      $region37: #{distance_head.2} parent=5 // pred_check
        _
      $region38: #{distance_head.2} parent=5 // pred_check_branch
        %238 = sbr.rel (%p235) target = $region40
      $region39: #{distance_head.2} parent=5 // pred_region
        %s239 = ssub.s32 %s15, 1
        %s240 = sand.u32 %s51, 1
        %s241 = scalar_lea.sflag [#allocation4], %s240
        %s242 = sand.u32 %s51, 1
        %s243 = smul.addr %s242, 64
        %s244 = scalar_lea.vmem [#allocation3], %s243
        // Predicated region
        $region41: #{distance_head.2} parent=39 // pred_check
          %p245 = pneg %p64
        $region42: #{distance_head.2} parent=39 // pred_check_branch
          %247 = sbr.rel (%p245) target = $region44
        $region43: #{distance_head.2} parent=39 // pred_region
          %248 = dma.done %s241, 1024
        $region44: #{distance_head.2} parent=39 // pred_fallthru
          _
        %s249 = sand.u32 %s51, 1
        %s250 = scalar_lea.sflag [#allocation4], %s249
        %s251 = sand.u32 %s51, 1
        %s252 = smul.addr %s251, 64
        %s253 = scalar_lea.vmem [#allocation3], %s252
        %p254 = pneg %p64
        %p255 = pneg %p61
        %p256 = pneg %p85
        %p257 = pneg %p82
        %p258 = pneg %p106
        %p259 = pneg %p103
        %p260 = pneg %p127
        %p261 = pneg %p124
        %p262 = pneg %p148
        %p263 = pneg %p145
        %p264 = pneg %p178
        %p265 = pneg %p175
        %p266 = scmp.lt.s32.totalorder %s25, 1
        %s267 = scalar_select %p266, %s25, 1
        %p268 = scmp.lt.s32.totalorder %s26, 0
        %s269 = scalar_select %p268, %s26, 0
        %p270 = scmp.lt.s32.totalorder %s27, 0
        %s271 = scalar_select %p270, %s27, 0
        %s272 = sadd.s32 %s271, %s269
        %s273 = sadd.s32 %s272, %s267
        %s274 = smul.addr %s273, 8
        %s275 = scalar_lea.vmem %s5, %s274
        %s276 = smul.u32 8, %s26
        %p277 = scmp.lt.s32.totalorder %s25, 1
        %s278 = scalar_select %p277, %s25, 1
        %p279 = scmp.lt.s32.totalorder %s26, 0
        %s280 = scalar_select %p279, %s26, 0
        %p281 = scmp.lt.s32.totalorder %s27, 0
        %s282 = scalar_select %p281, %s27, 0
        %s283 = sadd.s32 %s282, %s280
        %s284 = sadd.s32 %s283, %s278
        %s285 = smul.addr %s284, 8
        %s286 = scalar_lea.vmem %s5, %s285
        %v288 = vld [vmem:[%s244] sm:$0xff]
        %v289 = vld [vmem:[%s244 + $0x8] sm:$0xff]
        %v290 = vld [vmem:[%s244 + $0x10] sm:$0xff]
        %v291 = vld [vmem:[%s244 + $0x18] sm:$0xff]
        %v292 = vld [vmem:[%s244 + $0x20] sm:$0xff]
        %v293 = vld [vmem:[%s244 + $0x28] sm:$0xff]
        %v294 = vld [vmem:[%s244 + $0x30] sm:$0xff]
        %v295 = vld [vmem:[%s244 + $0x38] sm:$0xff]
        %v296 = vpack.c.bf16 %v289, %v288
        %v297 = vpack.c.bf16 %v291, %v290
        %v298 = vpack.c.bf16 %v293, %v292
        %v299 = vpack.c.bf16 %v295, %v294
        %v300 = vld [vmem:[%s1] sm:$0xf]
        %v301 = vld [vmem:[%s1 + $0x4] sm:$0xf]
        %v302 = vld [vmem:[%s1 + $0x8] sm:$0xf]
        %v303 = vld [vmem:[%s1 + $0xc] sm:$0xf]
        %v308 = vunpack.c.l.b16 %v300
        %v309 = vunpack.c.l.b16 %v301
        %v310 = vunpack.c.l.b16 %v302
        %v311 = vunpack.c.l.b16 %v303
        %v312 = vpack.c.b16 %v309, %v308
        %v313 = vpack.c.b16 %v311, %v310
        %vm316 = vcmask 261120
        %v318 = vsel %vm316, %v296, 0
        %v321 = vsel %vm316, %v297, 0
        %v324 = vsel %vm316, %v298, 0
        %v327 = vsel %vm316, %v299, 0
        %329 = vmatprep.subr.bf16.mxu0 0
        %330 = vmatpush1.bf16.msra.mxu0 0
        %331 = vmatprep.subr.bf16.mxu0 0
        %332 = vmatpush1.bf16.msra.mxu0 0
        %333 = vmatprep.subr.bf16.mxu0 0
        %334 = vmatpush1.bf16.msra.mxu0 0
        %335 = vmatprep.subr.bf16.mxu0 0
        %336 = vmatpush1.bf16.msra.mxu0 0
        %337 = vmatprep.subr.bf16.mxu0 0
        %338 = vmatpush1.bf16.msra.mxu0 0
        %339 = vmatprep.subr.bf16.mxu0 0
        %340 = vmatpush1.bf16.msra.mxu0 0
        %341 = vmatprep.subr.bf16.mxu0 0
        %342 = vmatpush1.bf16.msra.mxu0 %v313
        %343 = vmatprep.subr.bf16.mxu0 0
        %344 = vmatpush1.bf16.msra.mxu0 %v312
        %345 = vmatprep.subr.bf16.mxu0 0
        %346 = vmatpush2.bf16.msra.mxu0 0
        %347 = vmatprep.subr.bf16.mxu0 0
        %348 = vmatpush2.bf16.msra.mxu0 0
        %349 = vmatprep.subr.bf16.mxu0 0
        %350 = vmatpush2.bf16.msra.mxu0 0
        %351 = vmatprep.subr.bf16.mxu0 0
        %352 = vmatpush2.bf16.msra.mxu0 0
        %353 = vmatprep.subr.bf16.mxu0 0
        %354 = vmatpush2.bf16.msra.mxu0 0
        %355 = vmatprep.subr.bf16.mxu0 0
        %356 = vmatpush2.bf16.msra.mxu0 0
        %357 = vmatprep.subr.bf16.mxu0 0
        %358 = vmatpush2.bf16.msra.mxu0 0
        %359 = vmatprep.subr.bf16.mxu0 0
        %360 = vmatpush2.bf16.msra.mxu0 0
        %361 = vmatprep.mubr.bf16.mxu0 0
        %362 = vmatmul.mubr.bf16.gmra.mxu0 %v318
        %v363 = vpop.f32.mrf.mxu0
        %v364 = vadd.f32 0.0, %v363
        %v365 = vpop.f32.mrf.mxu0
        %v366 = vpop.f32.mrf.mxu0
        %v367 = vadd.f32 0.0, %v366
        %v368 = vpop.f32.mrf.mxu0
        %369 = vmatprep.mubr.bf16.mxu0 0
        %370 = vmatmul.mubr.bf16.gmra.mxu0 %v321
        %v371 = vpop.f32.mrf.mxu0
        %v372 = vadd.f32 0.0, %v371
        %v373 = vpop.f32.mrf.mxu0
        %v374 = vpop.f32.mrf.mxu0
        %v375 = vadd.f32 0.0, %v374
        %v376 = vpop.f32.mrf.mxu0
        %377 = vmatprep.mubr.bf16.mxu0 0
        %378 = vmatmul.mubr.bf16.gmra.mxu0 %v324
        %v379 = vpop.f32.mrf.mxu0
        %v380 = vadd.f32 0.0, %v379
        %v381 = vpop.f32.mrf.mxu0
        %v382 = vpop.f32.mrf.mxu0
        %v383 = vadd.f32 0.0, %v382
        %v384 = vpop.f32.mrf.mxu0
        %385 = vmatprep.mubr.bf16.mxu0 0
        %386 = vmatmul.mubr.bf16.gmra.mxu0 %v327
        %v387 = vpop.f32.mrf.mxu0
        %v388 = vadd.f32 0.0, %v387
        %v389 = vpop.f32.mrf.mxu0
        %v390 = vpop.f32.mrf.mxu0
        %v391 = vadd.f32 0.0, %v390
        %v392 = vpop.f32.mrf.mxu0
        %393 = vdwg.mxu0
        %v394 = vld [vmem:[%s2] sm:$0x1]
        %v396 = vlaneseq
        %v397 = vshrl.u32 %v396, 7
        %v398 = vsub.s32 0, %v397
        %v399 = vrot.slane %v394, %v398
        %v401 = vadd.f32 %v364, %v399
        %v402 = vadd.f32 %v367, %v399
        %v403 = vadd.f32 %v372, %v399
        %v404 = vadd.f32 %v375, %v399
        %v405 = vadd.f32 %v380, %v399
        %v406 = vadd.f32 %v383, %v399
        %v407 = vadd.f32 %v388, %v399
        %v408 = vadd.f32 %v391, %v399
        %v409 = vmul.f32 %v401, 0.5
        %v410 = vmul.f32 %v402, 0.5
        %v411 = vmul.f32 %v403, 0.5
        %v412 = vmul.f32 %v404, 0.5
        %v413 = vmul.f32 %v405, 0.5
        %v414 = vmul.f32 %v406, 0.5
        %v415 = vmul.f32 %v407, 0.5
        %v416 = vmul.f32 %v408, 0.5
        %v417 = vmul.f32 %v401, 0.70710677
        %v418 = vmul.f32 %v402, 0.70710677
        %v419 = vmul.f32 %v403, 0.70710677
        %v420 = vmul.f32 %v404, 0.70710677
        %v421 = vmul.f32 %v405, 0.70710677
        %v422 = vmul.f32 %v406, 0.70710677
        %v423 = vmul.f32 %v407, 0.70710677
        %v424 = vmul.f32 %v408, 0.70710677
        %v425 = verf.f32.pop %v417
        %v426 = verf.f32.pop %v418
        %v427 = verf.f32.pop %v419
        %v428 = verf.f32.pop %v420
        %v429 = verf.f32.pop %v421
        %v430 = verf.f32.pop %v422
        %v431 = verf.f32.pop %v423
        %v432 = verf.f32.pop %v424
        %v433 = vadd.f32 %v425, 1.0
        %v434 = vadd.f32 %v426, 1.0
        %v435 = vadd.f32 %v427, 1.0
        %v436 = vadd.f32 %v428, 1.0
        %v437 = vadd.f32 %v429, 1.0
        %v438 = vadd.f32 %v430, 1.0
        %v439 = vadd.f32 %v431, 1.0
        %v440 = vadd.f32 %v432, 1.0
        %v441 = vmul.f32 %v409, %v433
        %v442 = vmul.f32 %v410, %v434
        %v443 = vmul.f32 %v411, %v435
        %v444 = vmul.f32 %v412, %v436
        %v445 = vmul.f32 %v413, %v437
        %v446 = vmul.f32 %v414, %v438
        %v447 = vmul.f32 %v415, %v439
        %v448 = vmul.f32 %v416, %v440
        %v449 = vsel %vm316, %v441, 0.0
        %450 = vadd.xlane.f32.xlu0 %v449
        %v451 = vpop.xlane.xlu0 %450
        %v452 = vsel %vm316, %v442, 0.0
        %453 = vadd.xlane.f32.xlu0 %v452
        %v454 = vpop.xlane.xlu0 %453
        %v455 = vsel %vm316, %v443, 0.0
        %456 = vadd.xlane.f32.xlu0 %v455
        %v457 = vpop.xlane.xlu0 %456
        %v458 = vsel %vm316, %v444, 0.0
        %459 = vadd.xlane.f32.xlu0 %v458
        %v460 = vpop.xlane.xlu0 %459
        %v461 = vsel %vm316, %v445, 0.0
        %462 = vadd.xlane.f32.xlu0 %v461
        %v463 = vpop.xlane.xlu0 %462
        %v464 = vsel %vm316, %v446, 0.0
        %465 = vadd.xlane.f32.xlu0 %v464
        %v466 = vpop.xlane.xlu0 %465
        %v467 = vsel %vm316, %v447, 0.0
        %468 = vadd.xlane.f32.xlu0 %v467
        %v469 = vpop.xlane.xlu0 %468
        %v470 = vsel %vm316, %v448, 0.0
        %471 = vadd.xlane.f32.xlu0 %v470
        %v472 = vpop.xlane.xlu0 %471
        %v473 = vrcp.pop 32.0
        %v474 = vmul.f32 %v451, %v473
        %v475 = vmul.f32 %v454, %v473
        %v476 = vmul.f32 %v457, %v473
        %v477 = vmul.f32 %v460, %v473
        %v478 = vmul.f32 %v463, %v473
        %v479 = vmul.f32 %v466, %v473
        %v480 = vmul.f32 %v469, %v473
        %v481 = vmul.f32 %v472, %v473
        %v482 = vsub.f32 %v441, %v474
        %v483 = vsub.f32 %v442, %v475
        %v484 = vsub.f32 %v443, %v476
        %v485 = vsub.f32 %v444, %v477
        %v486 = vsub.f32 %v445, %v478
        %v487 = vsub.f32 %v446, %v479
        %v488 = vsub.f32 %v447, %v480
        %v489 = vsub.f32 %v448, %v481
        %v490 = vmul.f32 %v482, %v482
        %v491 = vmul.f32 %v483, %v483
        %v492 = vmul.f32 %v484, %v484
        %v493 = vmul.f32 %v485, %v485
        %v494 = vmul.f32 %v486, %v486
        %v495 = vmul.f32 %v487, %v487
        %v496 = vmul.f32 %v488, %v488
        %v497 = vmul.f32 %v489, %v489
        %v498 = vsel %vm316, %v490, 0.0
        %499 = vadd.xlane.f32.xlu0 %v498
        %v500 = vpop.xlane.xlu0 %499
        %v501 = vsel %vm316, %v491, 0.0
        %502 = vadd.xlane.f32.xlu0 %v501
        %v503 = vpop.xlane.xlu0 %502
        %v504 = vsel %vm316, %v492, 0.0
        %505 = vadd.xlane.f32.xlu0 %v504
        %v506 = vpop.xlane.xlu0 %505
        %v507 = vsel %vm316, %v493, 0.0
        %508 = vadd.xlane.f32.xlu0 %v507
        %v509 = vpop.xlane.xlu0 %508
        %v510 = vsel %vm316, %v494, 0.0
        %511 = vadd.xlane.f32.xlu0 %v510
        %v512 = vpop.xlane.xlu0 %511
        %v513 = vsel %vm316, %v495, 0.0
        %514 = vadd.xlane.f32.xlu0 %v513
        %v515 = vpop.xlane.xlu0 %514
        %v516 = vsel %vm316, %v496, 0.0
        %517 = vadd.xlane.f32.xlu0 %v516
        %v518 = vpop.xlane.xlu0 %517
        %v519 = vsel %vm316, %v497, 0.0
        %520 = vadd.xlane.f32.xlu0 %v519
        %v521 = vpop.xlane.xlu0 %520
        %v522 = vmul.f32 %v500, %v473
        %v523 = vmul.f32 %v503, %v473
        %v524 = vmul.f32 %v506, %v473
        %v525 = vmul.f32 %v509, %v473
        %v526 = vmul.f32 %v512, %v473
        %v527 = vmul.f32 %v515, %v473
        %v528 = vmul.f32 %v518, %v473
        %v529 = vmul.f32 %v521, %v473
        %v530 = vadd.f32 %v522, 1e-05
        %v531 = vadd.f32 %v523, 1e-05
        %v532 = vadd.f32 %v524, 1e-05
        %v533 = vadd.f32 %v525, 1e-05
        %v534 = vadd.f32 %v526, 1e-05
        %v535 = vadd.f32 %v527, 1e-05
        %v536 = vadd.f32 %v528, 1e-05
        %v537 = vadd.f32 %v529, 1e-05
        %v538 = vrsqrt.pop %v530
        %v539 = vrsqrt.pop %v531
        %v540 = vrsqrt.pop %v532
        %v541 = vrsqrt.pop %v533
        %v542 = vrsqrt.pop %v534
        %v543 = vrsqrt.pop %v535
        %v544 = vrsqrt.pop %v536
        %v545 = vrsqrt.pop %v537
        %v546 = vld [vmem:[%s3] sm:$0x1]
        %v548 = vlaneseq
        %v549 = vshrl.u32 %v548, 7
        %v550 = vsub.s32 0, %v549
        %v551 = vrot.slane %v546, %v550
        %v553 = vmul.f32 %v538, %v551
        %v554 = vmul.f32 %v539, %v551
        %v555 = vmul.f32 %v540, %v551
        %v556 = vmul.f32 %v541, %v551
        %v557 = vmul.f32 %v542, %v551
        %v558 = vmul.f32 %v543, %v551
        %v559 = vmul.f32 %v544, %v551
        %v560 = vmul.f32 %v545, %v551
        %v561 = vmul.f32 %v482, %v553
        %v562 = vmul.f32 %v483, %v554
        %v563 = vmul.f32 %v484, %v555
        %v564 = vmul.f32 %v485, %v556
        %v565 = vmul.f32 %v486, %v557
        %v566 = vmul.f32 %v487, %v558
        %v567 = vmul.f32 %v488, %v559
        %v568 = vmul.f32 %v489, %v560
        %v569 = vsel %vm316, %v561, 0.0
        %570 = vadd.xlane.f32.xlu0 %v569
        %v571 = vpop.xlane.xlu0 %570
        %v572 = vsel %vm316, %v562, 0.0
        %573 = vadd.xlane.f32.xlu0 %v572
        %v574 = vpop.xlane.xlu0 %573
        %v575 = vsel %vm316, %v563, 0.0
        %576 = vadd.xlane.f32.xlu0 %v575
        %v577 = vpop.xlane.xlu0 %576
        %v578 = vsel %vm316, %v564, 0.0
        %579 = vadd.xlane.f32.xlu0 %v578
        %v580 = vpop.xlane.xlu0 %579
        %v581 = vsel %vm316, %v565, 0.0
        %582 = vadd.xlane.f32.xlu0 %v581
        %v583 = vpop.xlane.xlu0 %582
        %v584 = vsel %vm316, %v566, 0.0
        %585 = vadd.xlane.f32.xlu0 %v584
        %v586 = vpop.xlane.xlu0 %585
        %v587 = vsel %vm316, %v567, 0.0
        %588 = vadd.xlane.f32.xlu0 %v587
        %v589 = vpop.xlane.xlu0 %588
        %v590 = vsel %vm316, %v568, 0.0
        %591 = vadd.xlane.f32.xlu0 %v590
        %v592 = vpop.xlane.xlu0 %591
        %s593 = sld [smem:[#allocation2]]
        %v594 = vstv %s593
        %v595 = vadd.f32 %v571, %v594
        %v596 = vadd.f32 %v574, %v594
        %v597 = vadd.f32 %v577, %v594
        %v598 = vadd.f32 %v580, %v594
        %v599 = vadd.f32 %v583, %v594
        %v600 = vadd.f32 %v586, %v594
        %v601 = vadd.f32 %v589, %v594
        %v602 = vadd.f32 %v592, %v594
        %v611 = vlaneseq
        %v612 = vand.u32 %v611, 127
        %v613 = vlaneseq
        %v614 = vshrl.u32 %v613, 7
        %v615 = vsub.s32 %v612, %v614
        %v616 = vrot.slane %v595, %v615
        %v617 = vlaneseq
        %v618 = vshrl.u32 %v617, 7
        %v619 = vsub.s32 %v612, %v618
        %v620 = vrot.slane %v596, %v619
        %v621 = vlaneseq
        %v622 = vshrl.u32 %v621, 7
        %v623 = vsub.s32 %v612, %v622
        %v624 = vrot.slane %v597, %v623
        %v625 = vlaneseq
        %v626 = vshrl.u32 %v625, 7
        %v627 = vsub.s32 %v612, %v626
        %v628 = vrot.slane %v598, %v627
        %v629 = vlaneseq
        %v630 = vshrl.u32 %v629, 7
        %v631 = vsub.s32 %v612, %v630
        %v632 = vrot.slane %v599, %v631
        %v633 = vlaneseq
        %v634 = vshrl.u32 %v633, 7
        %v635 = vsub.s32 %v612, %v634
        %v636 = vrot.slane %v600, %v635
        %v637 = vlaneseq
        %v638 = vshrl.u32 %v637, 7
        %v639 = vsub.s32 %v612, %v638
        %v640 = vrot.slane %v601, %v639
        %v641 = vlaneseq
        %v642 = vshrl.u32 %v641, 7
        %v643 = vsub.s32 %v612, %v642
        %v644 = vrot.slane %v602, %v643
        %vm645 = vcmask 1041409
        %v646 = vsel %vm645, %v620, %v616
        %vm647 = vcmask 1042434
        %v648 = vsel %vm647, %v624, %v646
        %vm649 = vcmask 1043459
        %v650 = vsel %vm649, %v628, %v648
        %vm651 = vcmask 1044484
        %v652 = vsel %vm651, %v632, %v650
        %vm653 = vcmask 1045509
        %v654 = vsel %vm653, %v636, %v652
        %vm655 = vcmask 1046534
        %v656 = vsel %vm655, %v640, %v654
        %vm657 = vcmask 1047559
        %v658 = vsel %vm657, %v644, %v656
        %vm660 = vcmask 64512
        %661 = vst.msk [vmem:[%s286] sm:$0xff] %vm660, %v658
        %p662 = scmp.lt.s32.totalorder %s25, 1
        %s663 = scalar_select %p662, %s25, 1
        %p664 = scmp.lt.s32.totalorder %s26, 0
        %s665 = scalar_select %p664, %s26, 0
        %p666 = scmp.lt.s32.totalorder %s27, 0
        %s667 = scalar_select %p666, %s27, 0
        %s668 = sadd.s32 %s667, %s665
        %s669 = sadd.s32 %s668, %s663
        %s670 = smul.addr %s669, 8
        %s671 = scalar_lea.vmem %s5, %s670
        // Predicated region
        $region45: #{distance_head.2} parent=39 // pred_check
          %p672 = pneg %p175
        $region46: #{distance_head.2} parent=39 // pred_check_branch
          %674 = sbr.rel (%p672) target = $region48
        $region47: #{distance_head.2} parent=39 // pred_region
          _
        $region48: #{distance_head.2} parent=39 // pred_fallthru
          _
      $region40: #{distance_head.2} parent=5 // pred_fallthru
        _
      %p675 = scmp.le.s32.totalorder 2, %s15
      // Predicated region
      $region49: #{distance_head.2} parent=5 // pred_check
        %p676 = pneg %p675
      $region50: #{distance_head.2} parent=5 // pred_check_branch
        %678 = sbr.rel (%p676) target = $region52
      $region51: #{distance_head.2} parent=5 // pred_region
        %s679 = ssub.s32 %s15, 2
        // Predicated region
        $region53: #{distance_head.2} parent=51 // pred_check
          %p680 = pneg %p181
        $region54: #{distance_head.2} parent=51 // pred_check_branch
          %682 = sbr.rel (%p680) target = $region56
        $region55: #{distance_head.2} parent=51 // pred_region
          %p683 = scmp.lt.s32.totalorder %s28, 1
          %s684 = scalar_select %p683, %s28, 1
          %p685 = scmp.lt.s32.totalorder %s29, 0
          %s686 = scalar_select %p685, %s29, 0
          %p687 = scmp.lt.s32.totalorder %s30, 0
          %s688 = scalar_select %p687, %s30, 0
          %s689 = sadd.s32 %s688, %s686
          %s690 = sadd.s32 %s689, %s684
          %s691 = smul.addr %s690, 8
          %s692 = scalar_lea.vmem %s5, %s691
        $region56: #{distance_head.2} parent=51 // pred_fallthru
          _
      $region52: #{distance_head.2} parent=5 // pred_fallthru
        _
    $region6: #{distance_head.2} parent=1 // loop_footer
      %s19 = sadd.s32 1, %s15
    $region7: #{distance_head.2} parent=1 // loop_footer_branch
      %14 = sbr.rel target = $region3
    $region8: #{distance_head.2} parent=1 // loop_exit
      _
    %693 = vsyncpa [#allocation4], 1
    %s694 = scalar_lea.sflag [#allocation4], 1
    %695 = vsyncpa %s694, 1

</llo_original>
